<compile_context>
chip_gen: v5e
topology: v5e:2x2
jax: 0.10.0
libtpu: 0.0.40
codegen_flags: <defaults>
</compile_context>

<pallas_src>
import functools

import jax
import jax.numpy as jnp
from jax.experimental import pallas as pl
from jax.experimental.pallas import tpu as pltpu

F32 = jnp.float32
BF16 = jnp.bfloat16
BN_EPS = 1e-5              # nn.BatchNorm2d default
GROUPS, BASE_WIDTH = 32, 4
_VMEM_LIMIT = 32 * 1024 * 1024


def _rup(x, m):
    return ((x + m - 1) // m) * m


def _cdiv(a, b):
    return -(-a // b)


def _kn_plan(K, N, max_tk=2048, max_tn=512):
    """Pick (tk, Kp, tn, Np); pad K/N up to the tile instead of requiring divisibility."""
    nk = _cdiv(K, max_tk)
    if nk == 1:
        Kp = tk = _rup(K, 16)          # single K step: block == full dim, no 128 constraint
    else:
        tk = _rup(_cdiv(K, nk), 128)
        Kp = nk * tk
    nn = _cdiv(N, max_tn)
    tn = _rup(_cdiv(N, nn), 128)
    Np = nn * tn
    return tk, Kp, tn, Np


def _m_plan(M, cap=256):
    Mp = _rup(M, 16)
    if Mp <= cap:
        return Mp, Mp
    return _rup(M, cap), cap


# ----------------------------------------------------------------------------
# Pallas kernels
# ----------------------------------------------------------------------------

def _matmul_kernel(*refs, nk, act, has_res):
    """Tiled matmul; f32 VMEM accumulator; fused affine (+residual) (+ReLU) epilogue."""
    if has_res:
        a_ref, b_ref, s_ref, c_ref, r_ref, o_ref, acc_ref = refs
    else:
        a_ref, b_ref, s_ref, c_ref, o_ref, acc_ref = refs
        r_ref = None

    @pl.when(pl.program_id(2) == 0)
    def _():
        acc_ref[...] = jnp.zeros_like(acc_ref)

    acc_ref[...] += jnp.dot(a_ref[...], b_ref[...],
                            preferred_element_type=jnp.float32)

    @pl.when(pl.program_id(2) == nk - 1)
    def _():
        y = acc_ref[...] * s_ref[...] + c_ref[...]
        if has_res:
            y = y + r_ref[...].astype(jnp.float32)
        if act == "relu":
            y = jnp.maximum(y, 0.0)
        o_ref[...] = y.astype(o_ref.dtype)


def _matmul_core(a, w_p, scale_p, bias_p, *, tk, tn, act="none",
                 residual=None, out_dtype=BF16):
    """out = act((a @ w_p) * scale + bias [+ residual]); returns padded (Mp, Np)."""
    M, Ka = a.shape
    Kp, Np = w_p.shape
    assert Ka <= Kp and Kp % tk == 0 and Np % tn == 0
    nk, nn = Kp // tk, Np // tn
    Mp, tm = _m_plan(M, 256)
    nm = Mp // tm
    # v7x megacore: make sure there are >= 2 parallel output blocks when cheap.
    if nm * nn == 1 and Np >= 256 and Np % 256 == 0:
        tn = Np // 2
        nn = 2

    a_p = a.astype(BF16)
    if (Mp - M) or (Kp - Ka):
        a_p = jnp.pad(a_p, ((0, Mp - M), (0, Kp - Ka)))

    operands = [a_p, w_p, scale_p, bias_p]
    in_specs = [
        pl.BlockSpec((tm, tk), lambda i, j, k: (i, k)),
        pl.BlockSpec((tk, tn), lambda i, j, k: (k, j)),
        pl.BlockSpec((1, tn), lambda i, j, k: (0, j)),
        pl.BlockSpec((1, tn), lambda i, j, k: (0, j)),
    ]
    has_res = residual is not None
    if has_res:
        rM, rN = residual.shape
        r_p = residual.astype(BF16)
        if (Mp - rM) or (Np - rN):
            r_p = jnp.pad(r_p, ((0, Mp - rM), (0, Np - rN)))
        operands.append(r_p)
        in_specs.append(pl.BlockSpec((tm, tn), lambda i, j, k: (i, j)))

    out = pl.pallas_call(
        functools.partial(_matmul_kernel, nk=nk, act=act, has_res=has_res),
        out_shape=jax.ShapeDtypeStruct((Mp, Np), out_dtype),
        grid_spec=pltpu.PrefetchScalarGridSpec(
            num_scalar_prefetch=0,
            grid=(nm, nn, nk),
            in_specs=in_specs,
            out_specs=pl.BlockSpec((tm, tn), lambda i, j, k: (i, j)),
            scratch_shapes=[pltpu.VMEM((tm, tn), jnp.float32)],
        ),
        compiler_params=pltpu.CompilerParams(
            dimension_semantics=("parallel", "parallel", "arbitrary"),
            vmem_limit_bytes=_VMEM_LIMIT),
    )(*operands)
    return out


def matmul_affine(a, pw, *, act="none", residual=None):
    out = _matmul_core(a, pw["w"], pw["scale"], pw["bias"],
                       tk=pw["tk"], tn=pw["tn"], act=act, residual=residual)
    return out[:a.shape[0], :pw["N"]]


def _matmul_plain(a, b):
    """Plain a @ b (no affine / activation) through the same Pallas kernel."""
    M, K = a.shape
    K2, Ncols = b.shape
    assert K == K2
    tk, Kp, tn, Np = _kn_plan(K, Ncols)
    b_p = b.astype(BF16)
    if (Kp - K) or (Np - Ncols):
        b_p = jnp.pad(b_p, ((0, Kp - K), (0, Np - Ncols)))
    scale = jnp.ones((1, Np), F32)
    bias = jnp.zeros((1, Np), F32)
    out = _matmul_core(a, b_p, scale, bias, tk=tk, tn=tn, act="none")
    return out[:M, :Ncols]


def _grouped_matmul_kernel(a_ref, b_ref, s_ref, c_ref, o_ref, *, gpb, act):
    """Per-group small matmuls on compact (group, K_g, cgo) weights; fused affine+ReLU."""
    for g in range(gpb):
        acc = jnp.dot(a_ref[g], b_ref[g], preferred_element_type=jnp.float32)
        y = acc * s_ref[g] + c_ref[g]
        if act == "relu":
            y = jnp.maximum(y, 0.0)
        o_ref[g] = y.astype(o_ref.dtype)


def _grouped_matmul(a, w, scale, bias, *, act="relu", out_dtype=BF16):
    """a: (G, M, Kg); w: (G, Kg, cgo); scale/bias: (G, 1, cgo).  Returns (G, M, cgo)."""
    G, M, Kg = a.shape
    cgo = w.shape[-1]
    Mp, tm = _m_plan(M, 256)
    nm = Mp // tm
    GB = 2 if G % 2 == 0 else 1          # >=2 parallel blocks for v7x's two TensorCores
    gpb = G // GB
    a_p = a.astype(BF16)
    if Mp > M:
        a_p = jnp.pad(a_p, ((0, 0), (0, Mp - M), (0, 0)))
    out = pl.pallas_call(
        functools.partial(_grouped_matmul_kernel, gpb=gpb, act=act),
        out_shape=jax.ShapeDtypeStruct((G, Mp, cgo), out_dtype),
        grid_spec=pltpu.PrefetchScalarGridSpec(
            num_scalar_prefetch=0,
            grid=(GB, nm),
            in_specs=[
                pl.BlockSpec((gpb, tm, Kg), lambda g, i: (g, i, 0)),
                pl.BlockSpec((gpb, Kg, cgo), lambda g, i: (g, 0, 0)),
                pl.BlockSpec((gpb, 1, cgo), lambda g, i: (g, 0, 0)),
                pl.BlockSpec((gpb, 1, cgo), lambda g, i: (g, 0, 0)),
            ],
            out_specs=pl.BlockSpec((gpb, tm, cgo), lambda g, i: (g, i, 0)),
        ),
        compiler_params=pltpu.CompilerParams(
            dimension_semantics=("parallel", "parallel"),
            vmem_limit_bytes=_VMEM_LIMIT),
    )(a_p, w, scale, bias)
    return out[:, :M, :]


def _tapmax_kernel(x_ref, o_ref, *, taps):
    m = x_ref[0]
    for t in range(1, taps):
        m = jnp.maximum(m, x_ref[t])
    o_ref[...] = m


def maxpool_3x3_s2_p1(x):
    """nn.MaxPool2d(kernel_size=3, stride=2, padding=1) on NHWC.

    Zero spatial padding is equivalent to -inf padding here because the input is
    post-ReLU (non-negative) and every pooling window contains real elements."""
    N, H, W, C = x.shape
    xp = jnp.pad(x, ((0, 0), (1, 1), (1, 1), (0, 0)))
    Ho = (H + 2 - 3) // 2 + 1
    Wo = (W + 2 - 3) // 2 + 1
    taps = []
    for dy in range(3):
        for dx in range(3):
            taps.append(xp[:, dy:dy + 2 * Ho:2, dx:dx + 2 * Wo:2, :]
                        .reshape(N * Ho * Wo, C))
    xt = jnp.stack(taps, axis=0)                      # (9, M, C)
    T, M, _ = xt.shape
    Mp, tm = _m_plan(M, 512)
    Cp = _rup(C, 128)
    if (Mp - M) or (Cp - C):
        xt = jnp.pad(xt, ((0, 0), (0, Mp - M), (0, Cp - C)))
    out = pl.pallas_call(
        functools.partial(_tapmax_kernel, taps=T),
        out_shape=jax.ShapeDtypeStruct((Mp, Cp), x.dtype),
        grid_spec=pltpu.PrefetchScalarGridSpec(
            num_scalar_prefetch=0,
            grid=(Mp // tm, Cp // 128),
            in_specs=[pl.BlockSpec((T, tm, 128), lambda i, j: (0, i, j))],
            out_specs=pl.BlockSpec((tm, 128), lambda i, j: (i, j)),
        ),
        compiler_params=pltpu.CompilerParams(
            dimension_semantics=("parallel", "parallel")),
    )(xt)
    return out[:M, :C].reshape(N, Ho, Wo, C)


# ----------------------------------------------------------------------------
# Conv / upsample wrappers (JAX glue around the Pallas kernels)
# ----------------------------------------------------------------------------

def conv2d(x, pw, *, stride=1, pad=0, act="none", residual=None):
    """x: NHWC bf16; pw: packed dense weight dict (pre-padded bf16, folded BN)."""
    N, H, W, C = x.shape
    kh, kw, cin, cout = pw["kh"], pw["kw"], pw["Cin"], pw["N"]
    assert C == cin, (C, cin)
    if pad:
        x = jnp.pad(x, ((0, 0), (pad, pad), (pad, pad), (0, 0)))
    Hp, Wp = H + 2 * pad, W + 2 * pad
    Ho = (Hp - kh) // stride + 1
    Wo = (Wp - kw) // stride + 1
    M = N * Ho * Wo
    K, Kp = pw["K"], pw["Kp"]
    if kh == 1 and kw == 1 and stride == 1:
        patches = x.reshape(M, C)
    else:
        cols = [x[:, dy:dy + stride * Ho:stride, dx:dx + stride * Wo:stride, :]
                for dy in range(kh) for dx in range(kw)]
        if Kp > K:
            # Build the K padding directly into the concat (avoids a separate pad copy).
            cols.append(jnp.zeros((N, Ho, Wo, Kp - K), x.dtype))
        patches = jnp.concatenate(cols, axis=-1).reshape(M, -1)
    res = residual.reshape(M, cout) if residual is not None else None
    out = _matmul_core(patches, pw["w"], pw["scale"], pw["bias"],
                       tk=pw["tk"], tn=pw["tn"], act=act, residual=res)
    return out[:M, :cout].reshape(N, Ho, Wo, cout)


def grouped_conv2d(x, pw, *, stride=1, act="relu"):
    """ResNeXt grouped 3x3 conv (padding=1) with compact per-group weights."""
    N, H, W, Cin = x.shape
    G, cgi, cgo, k = pw["G"], pw["cgi"], pw["cgo"], pw["k"]
    assert Cin == G * cgi, (Cin, G, cgi)
    xp = jnp.pad(x, ((0, 0), (1, 1), (1, 1), (0, 0)))
    Ho = (H + 2 - k) // stride + 1
    Wo = (W + 2 - k) // stride + 1
    M = N * Ho * Wo
    taps = [xp[:, dy:dy + stride * Ho:stride, dx:dx + stride * Wo:stride, :]
            for dy in range(k) for dx in range(k)]
    p = jnp.stack(taps, axis=3)                              # (N, Ho, Wo, k*k, Cin)
    p = p.reshape(M, k * k, G, cgi)
    p = jnp.transpose(p, (2, 0, 1, 3)).reshape(G, M, k * k * cgi)
    out = _grouped_matmul(p, pw["w"], pw["scale"], pw["bias"], act=act)   # (G, M, cgo)
    out = jnp.transpose(out, (1, 0, 2)).reshape(N, Ho, Wo, G * cgo)
    return out


_INTERP_CACHE = {}


def _interp_matrix(n):
    """(2n, n) bilinear 2x matrix, align_corners=True (matches nn.Upsample)."""
    if n in _INTERP_CACHE:
        return _INTERP_CACHE[n]
    no = 2 * n
    if n == 1:
        m = jnp.ones((no, 1), F32)
    else:
        src = jnp.arange(no, dtype=F32) * (n - 1) / (no - 1)
        lo = jnp.clip(jnp.floor(src).astype(jnp.int32), 0, n - 2)
        frac = src - lo.astype(F32)
        rows = jnp.arange(no)
        m = jnp.zeros((no, n), F32)
        m = m.at[rows, lo].set(1.0 - frac)
        m = m.at[rows, lo + 1].add(frac)
    _INTERP_CACHE[n] = m
    return m


def upsample2x_bilinear(x):
    """nn.Upsample(scale_factor=2, 'bilinear', align_corners=True) in separable form."""
    N, H, W, C = x.shape
    mh = _interp_matrix(H)                                    # (2H, H)
    mw = _interp_matrix(W)                                    # (2W, W)
    # rows: contract H  (batch folded into the matmul column dimension)
    xr = jnp.transpose(x, (1, 0, 2, 3)).reshape(H, N * W * C)
    t = _matmul_plain(mh, xr).reshape(2 * H, N, W, C)
    # cols: contract W
    tr = jnp.transpose(t, (2, 0, 1, 3)).reshape(W, 2 * H * N * C)
    u = _matmul_plain(mw, tr).reshape(2 * W, 2 * H, N, C)
    return jnp.transpose(u, (2, 1, 0, 3))                     # (N, 2H, 2W, C)


# ----------------------------------------------------------------------------
# Deterministic synthetic parameters (pre-folded, pre-transposed, pre-padded, bf16)
# ----------------------------------------------------------------------------

class ParamGen:
    def __init__(self, seed=0):
        self._key = jax.random.PRNGKey(seed)

    def key(self):
        self._key, sub = jax.random.split(self._key)
        return sub

    def conv(self, cout, cin, kh, kw):
        fan_in = cin * kh * kw
        return jax.random.normal(self.key(), (cout, cin, kh, kw), F32) * (2.0 / fan_in) ** 0.5

    def grouped_conv(self, width, k, groups):
        """Compact per-group weights (G, cgo, cgi, k, k) for a grouped conv."""
        cg = width // groups
        return (jax.random.normal(self.key(), (groups, cg, cg, k, k), F32)
                * (2.0 / (cg * k * k)) ** 0.5)

    def vec(self, c, scale=0.1):
        return jax.random.normal(self.key(), (c,), F32) * scale

    def bn(self, c):
        gamma = 1.0 + self.vec(c)
        beta = self.vec(c)
        mean = self.vec(c)
        var = 1.0 + jnp.abs(self.vec(c))
        return gamma, beta, mean, var


def fold_bn(gamma, beta, mean, var, conv_bias=None, eps=BN_EPS):
    s = gamma / jnp.sqrt(var + eps)
    b = beta - mean * s
    if conv_bias is not None:
        b = b + conv_bias * s
    return s, b


def pack_weight(w_oihw, scale, bias):
    """PyTorch (Cout,Cin,kh,kw) -> (Kp, Np) bf16 matmul weight + padded affine vectors."""
    cout, cin, kh, kw = w_oihw.shape
    K, N = kh * kw * cin, cout
    tk, Kp, tn, Np = _kn_plan(K, N)
    wmat = jnp.transpose(w_oihw, (2, 3, 1, 0)).reshape(K, N)
    wp = jnp.pad(wmat, ((0, Kp - K), (0, Np - N))).astype(BF16)
    sp = jnp.pad(scale.astype(F32), (0, Np - N)).reshape(1, Np)
    bp = jnp.pad(bias.astype(F32), (0, Np - N)).reshape(1, Np)
    return dict(w=wp, scale=sp, bias=bp, K=K, Kp=Kp, N=N, kh=kh, kw=kw, Cin=cin,
                tk=tk, tn=tn)


def pack_grouped(wg, scale, bias):
    """(G, cgo, cgi, k, k) -> compact (G, k*k*cgi, cgo) bf16 + per-group affine."""
    G, cgo, cgi, kh, kw = wg.shape
    wm = jnp.transpose(wg, (0, 3, 4, 2, 1)).reshape(G, kh * kw * cgi, cgo).astype(BF16)
    sp = scale.astype(F32).reshape(G, 1, cgo)
    bp = bias.astype(F32).reshape(G, 1, cgo)
    return dict(w=wm, scale=sp, bias=bp, G=G, cgi=cgi, cgo=cgo, k=kh)


def build_bottleneck(pg, inplanes, planes, stride):
    width = (planes * BASE_WIDTH // 64) * GROUPS
    out_ch = planes * 4
    p = {"stride": stride}
    s, b = fold_bn(*pg.bn(width))
    p["c1"] = pack_weight(pg.conv(width, inplanes, 1, 1), s, b)
    s, b = fold_bn(*pg.bn(width))
    p["c2"] = pack_grouped(pg.grouped_conv(width, 3, GROUPS), s, b)
    s, b = fold_bn(*pg.bn(out_ch))
    p["c3"] = pack_weight(pg.conv(out_ch, width, 1, 1), s, b)
    if stride != 1 or inplanes != out_ch:
        s, b = fold_bn(*pg.bn(out_ch))
        p["down"] = pack_weight(pg.conv(out_ch, inplanes, 1, 1), s, b)
    else:
        p["down"] = None
    return p


def build_layer(pg, inplanes, planes, blocks, stride):
    layer = [build_bottleneck(pg, inplanes, planes, stride)]
    for _ in range(blocks - 1):
        layer.append(build_bottleneck(pg, planes * 4, planes, 1))
    return layer


def build_vgg(pg, cin, cmid, cout):
    w1, cb1 = pg.conv(cmid, cin, 3, 3), pg.vec(cmid)
    s1, b1 = fold_bn(*pg.bn(cmid), conv_bias=cb1)
    w2, cb2 = pg.conv(cout, cmid, 3, 3), pg.vec(cout)
    s2, b2 = fold_bn(*pg.bn(cout), conv_bias=cb2)
    return (pack_weight(w1, s1, b1), pack_weight(w2, s2, b2))


def build_params(seed=42, n_classes=4):
    pg = ParamGen(seed)
    nb = [64, 256, 512, 1024, 2048]
    params = {}
    s, b = fold_bn(*pg.bn(64))
    params["stem"] = pack_weight(pg.conv(64, 3, 7, 7), s, b)   # conv1 (bias=False) + bn1
    params["layer1"] = build_layer(pg, 64, 64, 3, 1)
    params["layer2"] = build_layer(pg, 256, 128, 4, 2)
    params["layer3"] = build_layer(pg, 512, 256, 6, 2)
    params["layer4"] = build_layer(pg, 1024, 512, 3, 2)
    params["conv0_1"] = build_vgg(pg, nb[0] + nb[1], nb[0], nb[0])
    params["conv1_1"] = build_vgg(pg, nb[1] + nb[2], nb[1], nb[1])
    params["conv2_1"] = build_vgg(pg, nb[2] + nb[3], nb[2], nb[2])
    params["conv3_1"] = build_vgg(pg, nb[3] + nb[4], nb[3], nb[3])
    params["conv0_2"] = build_vgg(pg, nb[0] * 2 + nb[1], nb[0], nb[0])
    params["conv1_2"] = build_vgg(pg, nb[1] * 2 + nb[2], nb[1], nb[1])
    params["conv2_2"] = build_vgg(pg, nb[2] * 2 + nb[3], nb[2], nb[2])
    params["conv0_3"] = build_vgg(pg, nb[0] * 3 + nb[1], nb[0], nb[0])
    params["conv1_3"] = build_vgg(pg, nb[1] * 3 + nb[2], nb[1], nb[1])
    params["conv0_4"] = build_vgg(pg, nb[0] * 4 + nb[1], nb[0], nb[0])
    params["final"] = pack_weight(pg.conv(n_classes, nb[0], 1, 1),
                                  jnp.ones((n_classes,), F32), pg.vec(n_classes))
    return params


# ----------------------------------------------------------------------------
# Module forward passes
# ----------------------------------------------------------------------------

def bottleneck(x, p):
    """torchvision Bottleneck (groups=32, base_width=4); skip fused into projection."""
    identity = x
    h = conv2d(x, p["c1"], act="relu")                                  # 1x1 + bn + relu
    h = grouped_conv2d(h, p["c2"], stride=p["stride"], act="relu")      # 3x3 grouped + bn + relu
    if p["down"] is not None:
        identity = conv2d(x, p["down"], stride=p["stride"])             # 1x1 downsample + bn
    return conv2d(h, p["c3"], act="relu", residual=identity)            # 1x1 + bn + add + relu


def vgg_block(x, p):
    x = conv2d(x, p[0], pad=1, act="relu")
    x = conv2d(x, p[1], pad=1, act="relu")
    return x


def resnext50_nested_unet(inputs_nchw, params):
    x = jnp.transpose(inputs_nchw, (0, 2, 3, 1)).astype(BF16)     # NCHW -> NHWC
    up = upsample2x_bilinear
    cat = lambda ts: jnp.concatenate(ts, axis=-1)

    # conv0_0 = base_layers[:3] = conv7x7/s2 + BN + ReLU
    x0_0 = conv2d(x, params["stem"], stride=2, pad=3, act="relu")

    # conv1_0 = base_layers[3:5] = maxpool + layer1
    h = maxpool_3x3_s2_p1(x0_0)
    for p in params["layer1"]:
        h = bottleneck(h, p)
    x1_0 = h
    x0_1 = vgg_block(cat([x0_0, up(x1_0)]), params["conv0_1"])

    h = x1_0
    for p in params["layer2"]:
        h = bottleneck(h, p)
    x2_0 = h
    x1_1 = vgg_block(cat([x1_0, up(x2_0)]), params["conv1_1"])
    x0_2 = vgg_block(cat([x0_0, x0_1, up(x1_1)]), params["conv0_2"])

    h = x2_0
    for p in params["layer3"]:
        h = bottleneck(h, p)
    x3_0 = h
    x2_1 = vgg_block(cat([x2_0, up(x3_0)]), params["conv2_1"])
    x1_2 = vgg_block(cat([x1_0, x1_1, up(x2_1)]), params["conv1_2"])
    x0_3 = vgg_block(cat([x0_0, x0_1, x0_2, up(x1_2)]), params["conv0_3"])

    h = x3_0
    for p in params["layer4"]:
        h = bottleneck(h, p)
    x4_0 = h
    x3_1 = vgg_block(cat([x3_0, up(x4_0)]), params["conv3_1"])
    x2_2 = vgg_block(cat([x2_0, x2_1, up(x3_1)]), params["conv2_2"])
    x1_3 = vgg_block(cat([x1_0, x1_1, x1_2, up(x2_2)]), params["conv1_3"])
    x0_4 = vgg_block(cat([x0_0, x0_1, x0_2, x0_3, up(x1_3)]), params["conv0_4"])

    out = conv2d(up(x0_4), params["final"])                       # final 1x1 conv
    return jnp.transpose(out.astype(F32), (0, 3, 1, 2))           # NHWC -> NCHW


if __name__ == "__main__":
    inputs = jax.random.normal(jax.random.PRNGKey(0), (1, 3, 64, 64), F32)
    params = build_params(seed=42, n_classes=4)
    out = resnext50_nested_unet(inputs, params)
    out = jax.block_until_ready(out)
    assert out.shape == (1, 4, 64, 64), out.shape
    assert bool(jnp.all(jnp.isfinite(out)))
    print("KERNEL_OK")
</pallas_src>

<mosaic_0001>
module attributes {stable_mosaic.version = 11 : i64} {
  func.func @_matmul_kernel(%arg0: i32, %arg1: i32, %arg2: i32, %arg3: memref<256x160xbf16, #tpu.memory_space<vmem>>, %arg4: memref<160x128xbf16, #tpu.memory_space<vmem>>, %arg5: memref<1x128xf32, #tpu.memory_space<vmem>>, %arg6: memref<1x128xf32, #tpu.memory_space<vmem>>, %arg7: memref<256x128xbf16, #tpu.memory_space<vmem>>, %arg8: memref<256x128xf32, #tpu.memory_space<vmem>>) attributes {dimension_semantics = [#tpu.dimension_semantics<parallel>, #tpu.dimension_semantics<parallel>, #tpu.dimension_semantics<arbitrary>], iteration_bounds = array<i64: 4, 1, 1>, scalar_prefetch = 0 : i64, scratch_operands = 1 : i64, tpu.core_type = #tpu.core_type<tc>, window_params = [{transform_indices = @transform_0, window_bounds = array<i64: 256, 160>}, {transform_indices = @transform_1, window_bounds = array<i64: 160, 128>}, {transform_indices = @transform_2, window_bounds = array<i64: 1, 128>}, {transform_indices = @transform_3, window_bounds = array<i64: 1, 128>}, {transform_indices = @transform_4, window_bounds = array<i64: 256, 128>}]} {
    %c0_i32 = arith.constant 0 : i32
    %0 = arith.cmpi eq, %arg2, %c0_i32 : i32
    %1 = arith.extui %0 : i1 to i32
    %c0_i32_0 = arith.constant 0 : i32
    %2 = arith.cmpi ne, %1, %c0_i32_0 : i32
    scf.if %2 {
      %cst_10 = arith.constant 0.000000e+00 : f32
      %12 = vector.broadcast %cst_10 : f32 to vector<256x128xf32>
      %c0_11 = arith.constant 0 : index
      %c0_12 = arith.constant 0 : index
      %13 = vector.load %arg8[%c0_11, %c0_12] : memref<256x128xf32, #tpu.memory_space<vmem>>, vector<256x128xf32>
      tpu.vector_store %arg8[%c0_11, %c0_12], %12 {strides = array<i32>} : memref<256x128xf32, #tpu.memory_space<vmem>>, vector<256x128xf32>,
    } else {
    }
    %c0 = arith.constant 0 : index
    %c0_1 = arith.constant 0 : index
    %3 = vector.load %arg8[%c0, %c0_1] : memref<256x128xf32, #tpu.memory_space<vmem>>, vector<256x128xf32>
    %c0_2 = arith.constant 0 : index
    %c0_3 = arith.constant 0 : index
    %4 = vector.load %arg3[%c0_2, %c0_3] : memref<256x160xbf16, #tpu.memory_space<vmem>>, vector<256x160xbf16>
    %c0_4 = arith.constant 0 : index
    %c0_5 = arith.constant 0 : index
    %5 = vector.load %arg4[%c0_4, %c0_5] : memref<160x128xbf16, #tpu.memory_space<vmem>>, vector<160x128xbf16>
    %cst = arith.constant dense<0.000000e+00> : vector<256x128xf32>
    %6 = tpu.matmul %4, %5, %cst {dimension_numbers = #tpu.dot_dimension_numbers<[1], [0], [0], [1], [0, 0, 1, 1], [], []>} : vector<256x160xbf16>, vector<160x128xbf16>, vector<256x128xf32> -> vector<256x128xf32>
    %7 = arith.addf %3, %6 : vector<256x128xf32>
    %c0_6 = arith.constant 0 : index
    %c0_7 = arith.constant 0 : index
    %8 = vector.load %arg8[%c0_6, %c0_7] : memref<256x128xf32, #tpu.memory_space<vmem>>, vector<256x128xf32>
    tpu.vector_store %arg8[%c0_6, %c0_7], %7 {strides = array<i32>} : memref<256x128xf32, #tpu.memory_space<vmem>>, vector<256x128xf32>,
    %c0_i32_8 = arith.constant 0 : i32
    %9 = arith.cmpi eq, %arg2, %c0_i32_8 : i32
    %10 = arith.extui %9 : i1 to i32
    %c0_i32_9 = arith.constant 0 : i32
    %11 = arith.cmpi ne, %10, %c0_i32_9 : i32
    scf.if %11 {
      %c0_10 = arith.constant 0 : index
      %c0_11 = arith.constant 0 : index
      %12 = vector.load %arg8[%c0_10, %c0_11] : memref<256x128xf32, #tpu.memory_space<vmem>>, vector<256x128xf32>
      %c0_12 = arith.constant 0 : index
      %c0_13 = arith.constant 0 : index
      %13 = vector.load %arg5[%c0_12, %c0_13] : memref<1x128xf32, #tpu.memory_space<vmem>>, vector<1x128xf32>
      %14 = vector.broadcast %13 : vector<1x128xf32> to vector<256x128xf32>
      %15 = arith.mulf %12, %14 : vector<256x128xf32>
      %c0_14 = arith.constant 0 : index
      %c0_15 = arith.constant 0 : index
      %16 = vector.load %arg6[%c0_14, %c0_15] : memref<1x128xf32, #tpu.memory_space<vmem>>, vector<1x128xf32>
      %17 = vector.broadcast %16 : vector<1x128xf32> to vector<256x128xf32>
      %18 = arith.addf %15, %17 : vector<256x128xf32>
      %cst_16 = arith.constant 0.000000e+00 : f32
      %19 = vector.broadcast %cst_16 : f32 to vector<256x128xf32>
      %20 = arith.maximumf %18, %19 : vector<256x128xf32>
      %21 = arith.truncf %20 : vector<256x128xf32> to vector<256x128xbf16>
      %c0_17 = arith.constant 0 : index
      %c0_18 = arith.constant 0 : index
      %22 = vector.load %arg7[%c0_17, %c0_18] : memref<256x128xbf16, #tpu.memory_space<vmem>>, vector<256x128xbf16>
      tpu.vector_store %arg7[%c0_17, %c0_18], %21 {strides = array<i32>} : memref<256x128xbf16, #tpu.memory_space<vmem>>, vector<256x128xbf16>,
    } else {
    }
    return
  }
  func.func @transform_0(%arg0: i32, %arg1: i32, %arg2: i32) -> (i32, i32) {
    %c0_i32 = arith.constant 0 : i32
    return %arg0, %arg2 : i32, i32
  }
  func.func @transform_1(%arg0: i32, %arg1: i32, %arg2: i32) -> (i32, i32) {
    %c0_i32 = arith.constant 0 : i32
    return %arg2, %arg1 : i32, i32
  }
  func.func @transform_2(%arg0: i32, %arg1: i32, %arg2: i32) -> (i32, i32) {
    %c0_i32 = arith.constant 0 : i32
    %c0_i32_0 = arith.constant 0 : i32
    return %c0_i32, %arg1 : i32, i32
  }
  func.func @transform_3(%arg0: i32, %arg1: i32, %arg2: i32) -> (i32, i32) {
    %c0_i32 = arith.constant 0 : i32
    %c0_i32_0 = arith.constant 0 : i32
    return %c0_i32, %arg1 : i32, i32
  }
  func.func @transform_4(%arg0: i32, %arg1: i32, %arg2: i32) -> (i32, i32) {
    %c0_i32 = arith.constant 0 : i32
    return %arg0, %arg1 : i32, i32
  }
}

</mosaic_0001>

<llo_original>
// kernel: tpu_custom_call.1
$region0: #{tpu_custom_call.1}
  #allocation0 [shape = 'u32[]', space=smem, size = 0x4, offset = 0x4, fixed_abs, tag = 'smem constant byte address 0x4 - core index']
  #allocation1 [shape = 'u32[72,128]{1,0:T(1,128)}', space=vmem, size = 0x9000, scoped, tag = 'internal scratch']
  #allocation2 [shape = 'f32[256,128]{1,0:T(8,128)}', space=vmem, size = 0x20000, scoped, tag = 'scratch operand']
  %s0 = inlined_call_operand.vmem [shape: bf16[1024,160], index: 0, kind: input, shape index: {}]
  %s1 = inlined_call_operand.vmem [shape: bf16[160,128], index: 1, kind: input, shape index: {}]
  %s2 = inlined_call_operand.vmem [shape: f32[1,128], index: 2, kind: input, shape index: {}]
  %s3 = inlined_call_operand.vmem [shape: f32[1,128], index: 3, kind: input, shape index: {}]
  %s4 = inlined_call_operand.hbm [shape: bf16[1024,128], index: 4, kind: output, shape index: {}]
  %s5 = sld [smem:[#allocation0]]
  $region57: #{tpu_custom_call.1} parent=0
    _
  %s7 = ssub.s32 1, %s5
  %s8 = scalar_select 0, %s7, %s5
  $region1: #{tpu_custom_call.1} parent=0
    #allocation3 [shape = 'u8[131072]{0}', space=vmem, size = 0x20000, scoped, tag = 'output window, operand 0']
    #allocation4 [shape = 's32[2]{0}', space=sflag, size = 0x8, scoped, tag = 'scoped memory for tpu_custom_call.1']
    %9 = vsyncpa [#allocation4], 0
    %s10 = scalar_lea.sflag [#allocation4], 1
    %11 = vsyncpa %s10, 0
    loop: start=0, step=1, limit=6
    $region2: #{tpu_custom_call.1} parent=1 // loop_pre_header
      _
    $region3: #{tpu_custom_call.1} parent=1 // loop_header
      %s13 = sphi 0, %s17
      %p14 = scmp.ge.s32.totalorder %s13, 6
      %s20 = sphi 0, %s39
      %s21 = sphi 0, %s35
      %s22 = sphi 0, %s31
      %s23 = sphi 0, %s20
      %s24 = sphi 0, %s21
      %s25 = sphi 0, %s22
      %s26 = sphi 0, %s23
      %s27 = sphi 0, %s24
      %s28 = sphi 0, %s25
      %s44 = sphi 0, %s46
      %s47 = sphi 0, %s44
      %s48 = sphi 0, %s47
      %s64 = sphi 0, %s48
      %s72 = sphi 0, %s74
      %s75 = sphi 0, %s72
      %s76 = sphi 0, %s75
      %s92 = sphi 0, %s76
      %s98 = sphi 0, %s100
      %s101 = sphi 0, %s98
      %s102 = sphi 0, %s101
      %s118 = sphi 0, %s102
      %s124 = sphi 0, %s126
      %s127 = sphi 0, %s124
      %s128 = sphi 0, %s127
      %s144 = sphi 0, %s128
      %s152 = sphi 0, %s154
      %s155 = sphi 0, %s152
      %s156 = sphi 0, %s155
      %s172 = sphi 0, %s156
    $region4: #{tpu_custom_call.1} parent=1 // loop_header_branch
      %16 = sbr.rel (%p14) target = $region8
    $region5: #{tpu_custom_call.1} parent=1 // loop_body
      %s18 = ssub.s32 %s13, 1
      %s19 = ssub.s32 %s13, 2
      %s29 = sadd.s32 1, %s22
      %p30 = scmp.ge.s32.totalorder %s29, 1
      %s31 = scalar_select %p30, 0, %s29
      %s32 = sadd.s32 1, %s21
      %s33 = scalar_select %p30, %s32, %s21
      %p34 = scmp.ge.s32.totalorder %s33, 1
      %s35 = scalar_select %p34, 0, %s33
      %s36 = sadd.s32 1, %s20
      %s37 = scalar_select %p34, %s36, %s20
      %p38 = scmp.ge.s32.totalorder %s37, 4
      %s39 = scalar_select %p38, 0, %s37
      %s40 = ssub.s32 %s20, %s39
      %s41 = ssub.s32 %s22, %s31
      %s42 = sor.u32 %s40, %s41
      %p43 = scmp.eq.s32.totalorder %s42, 0
      %s45 = sadd.s32 %s44, 1
      %s46 = scalar_select %p43, %s44, %s45
      %p49 = pneg %p43
      %p50 = scmp.eq.s32.totalorder %s13, 3
      %p51 = por %p49, %p50
      %p52 = scmp.ne.s32.totalorder %s44, %s47
      %p53 = scmp.eq.s32.totalorder %s13, 0
      %p54 = por %p52, %p53
      %p55 = scmp.ne.s32.totalorder %s44, %s47
      %p56 = scmp.eq.s32.totalorder %s18, 3
      %p57 = por %p55, %p56
      %p58 = scmp.ne.s32.totalorder %s47, %s48
      %p59 = scmp.eq.s32.totalorder %s18, 0
      %p60 = por %p58, %p59
      %p61 = scmp.ne.s32.totalorder %s47, %s48
      %p62 = scmp.eq.s32.totalorder %s19, 3
      %p63 = por %p61, %p62
      %p65 = scmp.ne.s32.totalorder %s48, %s64
      %p66 = scmp.eq.s32.totalorder %s19, 0
      %p67 = por %p65, %p66
      %s68 = ssub.s32 %s22, %s31
      %s69 = ssub.s32 %s21, %s35
      %s70 = sor.u32 %s68, %s69
      %p71 = scmp.eq.s32.totalorder %s70, 0
      %s73 = sadd.s32 %s72, 1
      %s74 = scalar_select %p71, %s72, %s73
      %p77 = pneg %p71
      %p78 = scmp.eq.s32.totalorder %s13, 3
      %p79 = por %p77, %p78
      %p80 = scmp.ne.s32.totalorder %s72, %s75
      %p81 = scmp.eq.s32.totalorder %s13, 0
      %p82 = por %p80, %p81
      %p83 = scmp.ne.s32.totalorder %s72, %s75
      %p84 = scmp.eq.s32.totalorder %s18, 3
      %p85 = por %p83, %p84
      %p86 = scmp.ne.s32.totalorder %s75, %s76
      %p87 = scmp.eq.s32.totalorder %s18, 0
      %p88 = por %p86, %p87
      %p89 = scmp.ne.s32.totalorder %s75, %s76
      %p90 = scmp.eq.s32.totalorder %s19, 3
      %p91 = por %p89, %p90
      %p93 = scmp.ne.s32.totalorder %s76, %s92
      %p94 = scmp.eq.s32.totalorder %s19, 0
      %p95 = por %p93, %p94
      %s96 = ssub.s32 %s21, %s35
      %p97 = scmp.eq.s32.totalorder %s96, 0
      %s99 = sadd.s32 %s98, 1
      %s100 = scalar_select %p97, %s98, %s99
      %p103 = pneg %p97
      %p104 = scmp.eq.s32.totalorder %s13, 3
      %p105 = por %p103, %p104
      %p106 = scmp.ne.s32.totalorder %s98, %s101
      %p107 = scmp.eq.s32.totalorder %s13, 0
      %p108 = por %p106, %p107
      %p109 = scmp.ne.s32.totalorder %s98, %s101
      %p110 = scmp.eq.s32.totalorder %s18, 3
      %p111 = por %p109, %p110
      %p112 = scmp.ne.s32.totalorder %s101, %s102
      %p113 = scmp.eq.s32.totalorder %s18, 0
      %p114 = por %p112, %p113
      %p115 = scmp.ne.s32.totalorder %s101, %s102
      %p116 = scmp.eq.s32.totalorder %s19, 3
      %p117 = por %p115, %p116
      %p119 = scmp.ne.s32.totalorder %s102, %s118
      %p120 = scmp.eq.s32.totalorder %s19, 0
      %p121 = por %p119, %p120
      %s122 = ssub.s32 %s21, %s35
      %p123 = scmp.eq.s32.totalorder %s122, 0
      %s125 = sadd.s32 %s124, 1
      %s126 = scalar_select %p123, %s124, %s125
      %p129 = pneg %p123
      %p130 = scmp.eq.s32.totalorder %s13, 3
      %p131 = por %p129, %p130
      %p132 = scmp.ne.s32.totalorder %s124, %s127
      %p133 = scmp.eq.s32.totalorder %s13, 0
      %p134 = por %p132, %p133
      %p135 = scmp.ne.s32.totalorder %s124, %s127
      %p136 = scmp.eq.s32.totalorder %s18, 3
      %p137 = por %p135, %p136
      %p138 = scmp.ne.s32.totalorder %s127, %s128
      %p139 = scmp.eq.s32.totalorder %s18, 0
      %p140 = por %p138, %p139
      %p141 = scmp.ne.s32.totalorder %s127, %s128
      %p142 = scmp.eq.s32.totalorder %s19, 3
      %p143 = por %p141, %p142
      %p145 = scmp.ne.s32.totalorder %s128, %s144
      %p146 = scmp.eq.s32.totalorder %s19, 0
      %p147 = por %p145, %p146
      %s148 = ssub.s32 %s20, %s39
      %s149 = ssub.s32 %s21, %s35
      %s150 = sor.u32 %s148, %s149
      %p151 = scmp.eq.s32.totalorder %s150, 0
      %s153 = sadd.s32 %s152, 1
      %s154 = scalar_select %p151, %s152, %s153
      %p157 = pneg %p151
      %p158 = scmp.eq.s32.totalorder %s13, 3
      %p159 = por %p157, %p158
      %p160 = scmp.ne.s32.totalorder %s152, %s155
      %p161 = scmp.eq.s32.totalorder %s13, 0
      %p162 = por %p160, %p161
      %p163 = scmp.ne.s32.totalorder %s152, %s155
      %p164 = scmp.eq.s32.totalorder %s18, 3
      %p165 = por %p163, %p164
      %p166 = scmp.ne.s32.totalorder %s155, %s156
      %p167 = scmp.eq.s32.totalorder %s18, 0
      %p168 = por %p166, %p167
      %p169 = scmp.ne.s32.totalorder %s155, %s156
      %p170 = scmp.eq.s32.totalorder %s19, 3
      %p171 = por %p169, %p170
      %p173 = scmp.ne.s32.totalorder %s156, %s172
      %p174 = scmp.eq.s32.totalorder %s19, 0
      %p175 = por %p173, %p174
      %p176 = scmp.le.s32.totalorder 1, %s13
      %p177 = scmp.lt.s32.totalorder %s13, 5
      %p178 = pnand %p176, %p177
      %p179 = pneg %p178
      // Predicated region
      $region9: #{tpu_custom_call.1} parent=5 // pred_check
        _
      $region10: #{tpu_custom_call.1} parent=5 // pred_check_branch
        %181 = sbr.rel (%p178) target = $region12
      $region11: #{tpu_custom_call.1} parent=5 // pred_region
        %s182 = ssub.s32 %s13, 1
        // Predicated region
        $region13: #{tpu_custom_call.1} parent=11 // pred_check
          %p183 = pneg %p88
        $region14: #{tpu_custom_call.1} parent=11 // pred_check_branch
          %185 = sbr.rel (%p183) target = $region16
        $region15: #{tpu_custom_call.1} parent=11 // pred_region
          %s186 = smul.u32 20, %s25
          %p187 = scmp.lt.s32.totalorder %s186, 19
          %s188 = scalar_select %p187, %s186, 19
          %p189 = scmp.lt.s32.totalorder %s24, 0
          %s190 = scalar_select %p189, %s24, 0
          %s191 = sadd.s32 %s190, %s188
          %s192 = smul.addr %s191, 4
          %s193 = scalar_lea.vmem %s1, %s192
          %s194 = smul.u32 20, %s25
        $region16: #{tpu_custom_call.1} parent=11 // pred_fallthru
          _
        // Predicated region
        $region17: #{tpu_custom_call.1} parent=11 // pred_check
          %p195 = pneg %p114
        $region18: #{tpu_custom_call.1} parent=11 // pred_check_branch
          %197 = sbr.rel (%p195) target = $region20
        $region19: #{tpu_custom_call.1} parent=11 // pred_region
          %p198 = scmp.lt.s32.totalorder %s24, 0
          %s199 = scalar_select %p198, %s24, 0
          %s200 = scalar_lea.vmem %s2, %s199
        $region20: #{tpu_custom_call.1} parent=11 // pred_fallthru
          _
        // Predicated region
        $region21: #{tpu_custom_call.1} parent=11 // pred_check
          %p201 = pneg %p140
        $region22: #{tpu_custom_call.1} parent=11 // pred_check_branch
          %203 = sbr.rel (%p201) target = $region24
        $region23: #{tpu_custom_call.1} parent=11 // pred_region
          %p204 = scmp.lt.s32.totalorder %s24, 0
          %s205 = scalar_select %p204, %s24, 0
          %s206 = scalar_lea.vmem %s3, %s205
        $region24: #{tpu_custom_call.1} parent=11 // pred_fallthru
          _
      $region12: #{tpu_custom_call.1} parent=5 // pred_fallthru
        _
      %p207 = scmp.lt.s32.totalorder %s13, 4
      // Predicated region
      $region25: #{tpu_custom_call.1} parent=5 // pred_check
        %p208 = pneg %p207
      $region26: #{tpu_custom_call.1} parent=5 // pred_check_branch
        %210 = sbr.rel (%p208) target = $region28
      $region27: #{tpu_custom_call.1} parent=5 // pred_region
        // Predicated region
        $region29: #{tpu_custom_call.1} parent=27 // pred_check
          %p211 = pneg %p54
        $region30: #{tpu_custom_call.1} parent=27 // pred_check_branch
          %213 = sbr.rel (%p211) target = $region32
        $region31: #{tpu_custom_call.1} parent=27 // pred_region
          %s214 = smul.u32 32, %s20
          %s215 = smul.u32 2, %s22
          %p216 = scmp.lt.s32.totalorder %s214, 127
          %s217 = scalar_select %p216, %s214, 127
          %p218 = scmp.lt.s32.totalorder %s215, 1
          %s219 = scalar_select %p218, %s215, 1
          %s220 = smul.addr %s217, 2
          %s221 = sadd.s32 %s219, %s220
          %s222 = smul.addr %s221, 4
          %s223 = scalar_lea.vmem %s0, %s222
          %s224 = smul.u32 32, %s20
          %s225 = smul.u32 2, %s22
        $region32: #{tpu_custom_call.1} parent=27 // pred_fallthru
          _
      $region28: #{tpu_custom_call.1} parent=5 // pred_fallthru
        _
      %p226 = scmp.le.s32.totalorder 1, %s13
      %p227 = scmp.lt.s32.totalorder %s13, 5
      %p228 = pnand %p226, %p227
      %p229 = pneg %p228
      // Predicated region
      $region33: #{tpu_custom_call.1} parent=5 // pred_check
        _
      $region34: #{tpu_custom_call.1} parent=5 // pred_check_branch
        %231 = sbr.rel (%p228) target = $region36
      $region35: #{tpu_custom_call.1} parent=5 // pred_region
        %s232 = ssub.s32 %s13, 1
        %s233 = smul.u32 32, %s23
        %s234 = smul.u32 2, %s25
        %p235 = scmp.lt.s32.totalorder %s233, 127
        %s236 = scalar_select %p235, %s233, 127
        %p237 = scmp.lt.s32.totalorder %s234, 1
        %s238 = scalar_select %p237, %s234, 1
        %s239 = smul.addr %s236, 2
        %s240 = sadd.s32 %s238, %s239
        %s241 = smul.addr %s240, 4
        %s242 = scalar_lea.vmem %s0, %s241
        %p243 = pneg %p60
        %p244 = pneg %p57
        %s245 = smul.u32 20, %s25
        %p246 = scmp.lt.s32.totalorder %s245, 19
        %s247 = scalar_select %p246, %s245, 19
        %p248 = scmp.lt.s32.totalorder %s24, 0
        %s249 = scalar_select %p248, %s24, 0
        %s250 = sadd.s32 %s249, %s247
        %s251 = smul.addr %s250, 4
        %s252 = scalar_lea.vmem %s1, %s251
        %p253 = pneg %p88
        %p254 = pneg %p85
        %p255 = scmp.lt.s32.totalorder %s24, 0
        %s256 = scalar_select %p255, %s24, 0
        %s257 = scalar_lea.vmem %s2, %s256
        %p258 = pneg %p114
        %p259 = pneg %p111
        %p260 = scmp.lt.s32.totalorder %s24, 0
        %s261 = scalar_select %p260, %s24, 0
        %s262 = scalar_lea.vmem %s3, %s261
        %p263 = pneg %p140
        %p264 = pneg %p137
        %p265 = pneg %p168
        %p266 = pneg %p165
        %s267 = sand.u32 %s155, 1
        %s268 = scalar_lea.sflag [#allocation4], %s267
        %s269 = sand.u32 %s155, 1
        %s270 = smul.addr %s269, 128
        %s271 = scalar_lea.vmem [#allocation3], %s270
        %s272 = smul.u32 32, %s23
        %s273 = smul.u32 2, %s25
        %p274 = scmp.lt.s32.totalorder %s272, 127
        %s275 = scalar_select %p274, %s272, 127
        %p276 = scmp.lt.s32.totalorder %s273, 1
        %s277 = scalar_select %p276, %s273, 1
        %s278 = smul.addr %s275, 2
        %s279 = sadd.s32 %s277, %s278
        %s280 = smul.addr %s279, 4
        %s281 = scalar_lea.vmem %s0, %s280
        %s282 = smul.u32 32, %s23
        %s283 = smul.u32 2, %s25
        %s284 = smul.u32 20, %s25
        %p285 = scmp.lt.s32.totalorder %s284, 19
        %s286 = scalar_select %p285, %s284, 19
        %p287 = scmp.lt.s32.totalorder %s24, 0
        %s288 = scalar_select %p287, %s24, 0
        %s289 = sadd.s32 %s288, %s286
        %s290 = smul.addr %s289, 4
        %s291 = scalar_lea.vmem %s1, %s290
        %s292 = smul.u32 20, %s25
        %p293 = scmp.lt.s32.totalorder %s24, 0
        %s294 = scalar_select %p293, %s24, 0
        %s295 = scalar_lea.vmem %s2, %s294
        %p296 = scmp.lt.s32.totalorder %s24, 0
        %s297 = scalar_select %p296, %s24, 0
        %s298 = scalar_lea.vmem %s3, %s297
        %s299 = smul.u32 32, %s23
        %p301 = scmp.eq.s32.totalorder %s25, 0
        // Predicated region
        $region37: #{tpu_custom_call.1} parent=35 // pred_check
          %p302 = pneg %p301
        $region38: #{tpu_custom_call.1} parent=35 // pred_check_branch
          %304 = sbr.rel (%p302) target = $region40
        $region39: #{tpu_custom_call.1} parent=35 // pred_region
          %305 = vst [vmem:[#allocation2] sm:$0xff] 0.0
          %306 = vst [vmem:[#allocation2 + $0x8] sm:$0xff] 0.0
          %307 = vst [vmem:[#allocation2 + $0x10] sm:$0xff] 0.0
          %308 = vst [vmem:[#allocation2 + $0x18] sm:$0xff] 0.0
          %309 = vst [vmem:[#allocation2 + $0x20] sm:$0xff] 0.0
          %310 = vst [vmem:[#allocation2 + $0x28] sm:$0xff] 0.0
          %311 = vst [vmem:[#allocation2 + $0x30] sm:$0xff] 0.0
          %312 = vst [vmem:[#allocation2 + $0x38] sm:$0xff] 0.0
          %313 = vst [vmem:[#allocation2 + $0x40] sm:$0xff] 0.0
          %314 = vst [vmem:[#allocation2 + $0x48] sm:$0xff] 0.0
          %315 = vst [vmem:[#allocation2 + $0x50] sm:$0xff] 0.0
          %316 = vst [vmem:[#allocation2 + $0x58] sm:$0xff] 0.0
          %317 = vst [vmem:[#allocation2 + $0x60] sm:$0xff] 0.0
          %318 = vst [vmem:[#allocation2 + $0x68] sm:$0xff] 0.0
          %319 = vst [vmem:[#allocation2 + $0x70] sm:$0xff] 0.0
          %320 = vst [vmem:[#allocation2 + $0x78] sm:$0xff] 0.0
          %321 = vst [vmem:[#allocation2 + $0x80] sm:$0xff] 0.0
          %322 = vst [vmem:[#allocation2 + $0x88] sm:$0xff] 0.0
          %323 = vst [vmem:[#allocation2 + $0x90] sm:$0xff] 0.0
          %324 = vst [vmem:[#allocation2 + $0x98] sm:$0xff] 0.0
          %325 = vst [vmem:[#allocation2 + $0xa0] sm:$0xff] 0.0
          %326 = vst [vmem:[#allocation2 + $0xa8] sm:$0xff] 0.0
          %327 = vst [vmem:[#allocation2 + $0xb0] sm:$0xff] 0.0
          %328 = vst [vmem:[#allocation2 + $0xb8] sm:$0xff] 0.0
          %329 = vst [vmem:[#allocation2 + $0xc0] sm:$0xff] 0.0
          %330 = vst [vmem:[#allocation2 + $0xc8] sm:$0xff] 0.0
          %331 = vst [vmem:[#allocation2 + $0xd0] sm:$0xff] 0.0
          %332 = vst [vmem:[#allocation2 + $0xd8] sm:$0xff] 0.0
          %333 = vst [vmem:[#allocation2 + $0xe0] sm:$0xff] 0.0
          %334 = vst [vmem:[#allocation2 + $0xe8] sm:$0xff] 0.0
          %335 = vst [vmem:[#allocation2 + $0xf0] sm:$0xff] 0.0
          %336 = vst [vmem:[#allocation2 + $0xf8] sm:$0xff] 0.0
        $region40: #{tpu_custom_call.1} parent=35 // pred_fallthru
          _
        %v337 = vld [vmem:[#allocation2] sm:$0xff]
        %v338 = vld [vmem:[#allocation2 + $0x8] sm:$0xff]
        %v339 = vld [vmem:[#allocation2 + $0x10] sm:$0xff]
        %v340 = vld [vmem:[#allocation2 + $0x18] sm:$0xff]
        %v341 = vld [vmem:[#allocation2 + $0x20] sm:$0xff]
        %v342 = vld [vmem:[#allocation2 + $0x28] sm:$0xff]
        %v343 = vld [vmem:[#allocation2 + $0x30] sm:$0xff]
        %v344 = vld [vmem:[#allocation2 + $0x38] sm:$0xff]
        %v345 = vld [vmem:[#allocation2 + $0x40] sm:$0xff]
        %v346 = vld [vmem:[#allocation2 + $0x48] sm:$0xff]
        %v347 = vld [vmem:[#allocation2 + $0x50] sm:$0xff]
        %v348 = vld [vmem:[#allocation2 + $0x58] sm:$0xff]
        %v349 = vld [vmem:[#allocation2 + $0x60] sm:$0xff]
        %v350 = vld [vmem:[#allocation2 + $0x68] sm:$0xff]
        %v351 = vld [vmem:[#allocation2 + $0x70] sm:$0xff]
        %v352 = vld [vmem:[#allocation2 + $0x78] sm:$0xff]
        %v353 = vld [vmem:[#allocation2 + $0x80] sm:$0xff]
        %v354 = vld [vmem:[#allocation2 + $0x88] sm:$0xff]
        %v355 = vld [vmem:[#allocation2 + $0x90] sm:$0xff]
        %v356 = vld [vmem:[#allocation2 + $0x98] sm:$0xff]
        %v357 = vld [vmem:[#allocation2 + $0xa0] sm:$0xff]
        %v358 = vld [vmem:[#allocation2 + $0xa8] sm:$0xff]
        %v359 = vld [vmem:[#allocation2 + $0xb0] sm:$0xff]
        %v360 = vld [vmem:[#allocation2 + $0xb8] sm:$0xff]
        %v361 = vld [vmem:[#allocation2 + $0xc0] sm:$0xff]
        %v362 = vld [vmem:[#allocation2 + $0xc8] sm:$0xff]
        %v363 = vld [vmem:[#allocation2 + $0xd0] sm:$0xff]
        %v364 = vld [vmem:[#allocation2 + $0xd8] sm:$0xff]
        %v365 = vld [vmem:[#allocation2 + $0xe0] sm:$0xff]
        %v366 = vld [vmem:[#allocation2 + $0xe8] sm:$0xff]
        %v367 = vld [vmem:[#allocation2 + $0xf0] sm:$0xff]
        %v368 = vld [vmem:[#allocation2 + $0xf8] sm:$0xff]
        %v369 = vld [vmem:[%s281] sm:$0xff]
        %v370 = vld [vmem:[%s281 + $0x8] sm:$0xff]
        %v371 = vld [vmem:[%s281 + $0x10] sm:$0xff]
        %v372 = vld [vmem:[%s281 + $0x18] sm:$0xff]
        %v373 = vld [vmem:[%s281 + $0x20] sm:$0xff]
        %v374 = vld [vmem:[%s281 + $0x28] sm:$0xff]
        %v375 = vld [vmem:[%s281 + $0x30] sm:$0xff]
        %v376 = vld [vmem:[%s281 + $0x38] sm:$0xff]
        %v377 = vld [vmem:[%s281 + $0x40] sm:$0xff]
        %v378 = vld [vmem:[%s281 + $0x48] sm:$0xff]
        %v379 = vld [vmem:[%s281 + $0x50] sm:$0xff]
        %v380 = vld [vmem:[%s281 + $0x58] sm:$0xff]
        %v381 = vld [vmem:[%s281 + $0x60] sm:$0xff]
        %v382 = vld [vmem:[%s281 + $0x68] sm:$0xff]
        %v383 = vld [vmem:[%s281 + $0x70] sm:$0xff]
        %v384 = vld [vmem:[%s281 + $0x78] sm:$0xff]
        %v385 = vld [vmem:[%s281 + $0x80] sm:$0xff]
        %v386 = vld [vmem:[%s281 + $0x88] sm:$0xff]
        %v387 = vld [vmem:[%s281 + $0x90] sm:$0xff]
        %v388 = vld [vmem:[%s281 + $0x98] sm:$0xff]
        %v389 = vld [vmem:[%s281 + $0xa0] sm:$0xff]
        %v390 = vld [vmem:[%s281 + $0xa8] sm:$0xff]
        %v391 = vld [vmem:[%s281 + $0xb0] sm:$0xff]
        %v392 = vld [vmem:[%s281 + $0xb8] sm:$0xff]
        %v393 = vld [vmem:[%s281 + $0xc0] sm:$0xff]
        %v394 = vld [vmem:[%s281 + $0xc8] sm:$0xff]
        %v395 = vld [vmem:[%s281 + $0xd0] sm:$0xff]
        %v396 = vld [vmem:[%s281 + $0xd8] sm:$0xff]
        %v397 = vld [vmem:[%s281 + $0xe0] sm:$0xff]
        %v398 = vld [vmem:[%s281 + $0xe8] sm:$0xff]
        %v399 = vld [vmem:[%s281 + $0xf0] sm:$0xff]
        %v400 = vld [vmem:[%s281 + $0xf8] sm:$0xff]
        %v401 = vld [vmem:[%s291] sm:$0xf]
        %v402 = vld [vmem:[%s291 + $0x4] sm:$0xf]
        %v403 = vld [vmem:[%s291 + $0x8] sm:$0xf]
        %v404 = vld [vmem:[%s291 + $0xc] sm:$0xf]
        %v405 = vld [vmem:[%s291 + $0x10] sm:$0xf]
        %v406 = vld [vmem:[%s291 + $0x14] sm:$0xf]
        %v407 = vld [vmem:[%s291 + $0x18] sm:$0xf]
        %v408 = vld [vmem:[%s291 + $0x1c] sm:$0xf]
        %v409 = vld [vmem:[%s291 + $0x20] sm:$0xf]
        %v410 = vld [vmem:[%s291 + $0x24] sm:$0xf]
        %v411 = vld [vmem:[%s291 + $0x28] sm:$0xf]
        %v412 = vld [vmem:[%s291 + $0x2c] sm:$0xf]
        %v413 = vld [vmem:[%s291 + $0x30] sm:$0xf]
        %v414 = vld [vmem:[%s291 + $0x34] sm:$0xf]
        %v415 = vld [vmem:[%s291 + $0x38] sm:$0xf]
        %v416 = vld [vmem:[%s291 + $0x3c] sm:$0xf]
        %v417 = vld [vmem:[%s291 + $0x40] sm:$0xf]
        %v418 = vld [vmem:[%s291 + $0x44] sm:$0xf]
        %v419 = vld [vmem:[%s291 + $0x48] sm:$0xf]
        %v420 = vld [vmem:[%s291 + $0x4c] sm:$0xf]
        %v453 = vunpack.c.l.b16 %v369
        %v454 = vunpack.c.h.b16 %v369
        %v455 = vunpack.c.l.b16 %v370
        %v456 = vunpack.c.h.b16 %v370
        %v457 = vunpack.c.l.b16 %v371
        %v458 = vunpack.c.h.b16 %v371
        %v459 = vunpack.c.l.b16 %v372
        %v460 = vunpack.c.h.b16 %v372
        %v461 = vunpack.c.l.b16 %v373
        %v462 = vunpack.c.h.b16 %v373
        %v463 = vunpack.c.l.b16 %v374
        %v464 = vunpack.c.h.b16 %v374
        %v465 = vunpack.c.l.b16 %v375
        %v466 = vunpack.c.h.b16 %v375
        %v467 = vunpack.c.l.b16 %v376
        %v468 = vunpack.c.h.b16 %v376
        %v469 = vunpack.c.l.b16 %v377
        %v470 = vunpack.c.h.b16 %v377
        %v471 = vunpack.c.l.b16 %v378
        %v472 = vunpack.c.h.b16 %v378
        %v473 = vunpack.c.l.b16 %v379
        %v474 = vunpack.c.h.b16 %v379
        %v475 = vunpack.c.l.b16 %v380
        %v476 = vunpack.c.h.b16 %v380
        %v477 = vunpack.c.l.b16 %v381
        %v478 = vunpack.c.h.b16 %v381
        %v479 = vunpack.c.l.b16 %v382
        %v480 = vunpack.c.h.b16 %v382
        %v481 = vunpack.c.l.b16 %v383
        %v482 = vunpack.c.h.b16 %v383
        %v483 = vunpack.c.l.b16 %v384
        %v484 = vunpack.c.h.b16 %v384
        %v485 = vunpack.c.l.b16 %v385
        %v486 = vunpack.c.h.b16 %v385
        %v487 = vunpack.c.l.b16 %v386
        %v488 = vunpack.c.h.b16 %v386
        %v489 = vunpack.c.l.b16 %v387
        %v490 = vunpack.c.h.b16 %v387
        %v491 = vunpack.c.l.b16 %v388
        %v492 = vunpack.c.h.b16 %v388
        %v493 = vunpack.c.l.b16 %v389
        %v494 = vunpack.c.h.b16 %v389
        %v495 = vunpack.c.l.b16 %v390
        %v496 = vunpack.c.h.b16 %v390
        %v497 = vunpack.c.l.b16 %v391
        %v498 = vunpack.c.h.b16 %v391
        %v499 = vunpack.c.l.b16 %v392
        %v500 = vunpack.c.h.b16 %v392
        %v501 = vunpack.c.l.b16 %v393
        %v502 = vunpack.c.h.b16 %v393
        %v503 = vunpack.c.l.b16 %v394
        %v504 = vunpack.c.h.b16 %v394
        %v505 = vunpack.c.l.b16 %v395
        %v506 = vunpack.c.h.b16 %v395
        %v507 = vunpack.c.l.b16 %v396
        %v508 = vunpack.c.h.b16 %v396
        %v509 = vunpack.c.l.b16 %v397
        %v510 = vunpack.c.h.b16 %v397
        %v511 = vunpack.c.l.b16 %v398
        %v512 = vunpack.c.h.b16 %v398
        %v513 = vunpack.c.l.b16 %v399
        %v514 = vunpack.c.h.b16 %v399
        %v515 = vunpack.c.l.b16 %v400
        %v516 = vunpack.c.h.b16 %v400
        %v517 = vpack.c.b16 %v455, %v453
        %v518 = vpack.c.b16 %v456, %v454
        %v519 = vpack.c.b16 %v459, %v457
        %v520 = vpack.c.b16 %v460, %v458
        %v521 = vpack.c.b16 %v463, %v461
        %v522 = vpack.c.b16 %v464, %v462
        %v523 = vpack.c.b16 %v467, %v465
        %v524 = vpack.c.b16 %v468, %v466
        %v525 = vpack.c.b16 %v471, %v469
        %v526 = vpack.c.b16 %v472, %v470
        %v527 = vpack.c.b16 %v475, %v473
        %v528 = vpack.c.b16 %v476, %v474
        %v529 = vpack.c.b16 %v479, %v477
        %v530 = vpack.c.b16 %v480, %v478
        %v531 = vpack.c.b16 %v483, %v481
        %v532 = vpack.c.b16 %v484, %v482
        %v533 = vpack.c.b16 %v487, %v485
        %v534 = vpack.c.b16 %v488, %v486
        %v535 = vpack.c.b16 %v491, %v489
        %v536 = vpack.c.b16 %v492, %v490
        %v537 = vpack.c.b16 %v495, %v493
        %v538 = vpack.c.b16 %v496, %v494
        %v539 = vpack.c.b16 %v499, %v497
        %v540 = vpack.c.b16 %v500, %v498
        %v541 = vpack.c.b16 %v503, %v501
        %v542 = vpack.c.b16 %v504, %v502
        %v543 = vpack.c.b16 %v507, %v505
        %v544 = vpack.c.b16 %v508, %v506
        %v545 = vpack.c.b16 %v511, %v509
        %v546 = vpack.c.b16 %v512, %v510
        %v547 = vpack.c.b16 %v515, %v513
        %v548 = vpack.c.b16 %v516, %v514
        %v585 = vunpack.c.l.b16 %v401
        %v586 = vunpack.c.l.b16 %v402
        %v587 = vunpack.c.l.b16 %v403
        %v588 = vunpack.c.l.b16 %v404
        %v589 = vunpack.c.l.b16 %v405
        %v590 = vunpack.c.l.b16 %v406
        %v591 = vunpack.c.l.b16 %v407
        %v592 = vunpack.c.l.b16 %v408
        %v593 = vunpack.c.l.b16 %v409
        %v594 = vunpack.c.l.b16 %v410
        %v595 = vunpack.c.l.b16 %v411
        %v596 = vunpack.c.l.b16 %v412
        %v597 = vunpack.c.l.b16 %v413
        %v598 = vunpack.c.l.b16 %v414
        %v599 = vunpack.c.l.b16 %v415
        %v600 = vunpack.c.l.b16 %v416
        %v601 = vunpack.c.l.b16 %v417
        %v602 = vunpack.c.l.b16 %v418
        %v603 = vunpack.c.l.b16 %v419
        %v604 = vunpack.c.l.b16 %v420
        %v605 = vpack.c.b16 %v586, %v585
        %v606 = vpack.c.b16 %v588, %v587
        %v607 = vpack.c.b16 %v590, %v589
        %v608 = vpack.c.b16 %v592, %v591
        %v609 = vpack.c.b16 %v594, %v593
        %v610 = vpack.c.b16 %v596, %v595
        %v611 = vpack.c.b16 %v598, %v597
        %v612 = vpack.c.b16 %v600, %v599
        %v613 = vpack.c.b16 %v602, %v601
        %v614 = vpack.c.b16 %v604, %v603
        %vm625 = vcmask 261120
        %v627 = vsel %vm625, %v518, 0
        %v630 = vsel %vm625, %v520, 0
        %v633 = vsel %vm625, %v522, 0
        %v636 = vsel %vm625, %v524, 0
        %v639 = vsel %vm625, %v526, 0
        %v642 = vsel %vm625, %v528, 0
        %v645 = vsel %vm625, %v530, 0
        %v648 = vsel %vm625, %v532, 0
        %v651 = vsel %vm625, %v534, 0
        %v654 = vsel %vm625, %v536, 0
        %v657 = vsel %vm625, %v538, 0
        %v660 = vsel %vm625, %v540, 0
        %v663 = vsel %vm625, %v542, 0
        %v666 = vsel %vm625, %v544, 0
        %v669 = vsel %vm625, %v546, 0
        %v672 = vsel %vm625, %v548, 0
        %674 = vmatpush.bf16.msra.mxu0 %v612
        %675 = vmatpush.bf16.msra.mxu0 %v611
        %676 = vmatpush.bf16.msra.mxu0 %v610
        %677 = vmatpush.bf16.msra.mxu0 %v609
        %678 = vmatpush.bf16.msra.mxu0 %v608
        %679 = vmatpush.bf16.msra.mxu0 %v607
        %680 = vmatpush.bf16.msra.mxu0 %v606
        %681 = vmatpush.bf16.msra.mxu0 %v605
        %682 = vmatmul.bf16.gmra.mxu0 %v517
        %v683 = vpop.f32.mrf.mxu0
        %v684 = vadd.f32 0.0, %v683
        %v685 = vpop.f32.mrf.mxu0
        %v686 = vadd.f32 0.0, %v685
        %687 = vmatmul.bf16.gmra.mxu0 %v519
        %v688 = vpop.f32.mrf.mxu0
        %v689 = vadd.f32 0.0, %v688
        %v690 = vpop.f32.mrf.mxu0
        %v691 = vadd.f32 0.0, %v690
        %692 = vmatmul.bf16.gmra.mxu0 %v521
        %v693 = vpop.f32.mrf.mxu0
        %v694 = vadd.f32 0.0, %v693
        %v695 = vpop.f32.mrf.mxu0
        %v696 = vadd.f32 0.0, %v695
        %697 = vmatmul.bf16.gmra.mxu0 %v523
        %v698 = vpop.f32.mrf.mxu0
        %v699 = vadd.f32 0.0, %v698
        %v700 = vpop.f32.mrf.mxu0
        %v701 = vadd.f32 0.0, %v700
        %702 = vmatmul.bf16.gmra.mxu0 %v525
        %v703 = vpop.f32.mrf.mxu0
        %v704 = vadd.f32 0.0, %v703
        %v705 = vpop.f32.mrf.mxu0
        %v706 = vadd.f32 0.0, %v705
        %707 = vmatmul.bf16.gmra.mxu0 %v527
        %v708 = vpop.f32.mrf.mxu0
        %v709 = vadd.f32 0.0, %v708
        %v710 = vpop.f32.mrf.mxu0
        %v711 = vadd.f32 0.0, %v710
        %712 = vmatmul.bf16.gmra.mxu0 %v529
        %v713 = vpop.f32.mrf.mxu0
        %v714 = vadd.f32 0.0, %v713
        %v715 = vpop.f32.mrf.mxu0
        %v716 = vadd.f32 0.0, %v715
        %717 = vmatmul.bf16.gmra.mxu0 %v531
        %v718 = vpop.f32.mrf.mxu0
        %v719 = vadd.f32 0.0, %v718
        %v720 = vpop.f32.mrf.mxu0
        %v721 = vadd.f32 0.0, %v720
        %722 = vmatmul.bf16.gmra.mxu0 %v533
        %v723 = vpop.f32.mrf.mxu0
        %v724 = vadd.f32 0.0, %v723
        %v725 = vpop.f32.mrf.mxu0
        %v726 = vadd.f32 0.0, %v725
        %727 = vmatmul.bf16.gmra.mxu0 %v535
        %v728 = vpop.f32.mrf.mxu0
        %v729 = vadd.f32 0.0, %v728
        %v730 = vpop.f32.mrf.mxu0
        %v731 = vadd.f32 0.0, %v730
        %732 = vmatmul.bf16.gmra.mxu0 %v537
        %v733 = vpop.f32.mrf.mxu0
        %v734 = vadd.f32 0.0, %v733
        %v735 = vpop.f32.mrf.mxu0
        %v736 = vadd.f32 0.0, %v735
        %737 = vmatmul.bf16.gmra.mxu0 %v539
        %v738 = vpop.f32.mrf.mxu0
        %v739 = vadd.f32 0.0, %v738
        %v740 = vpop.f32.mrf.mxu0
        %v741 = vadd.f32 0.0, %v740
        %742 = vmatmul.bf16.gmra.mxu0 %v541
        %v743 = vpop.f32.mrf.mxu0
        %v744 = vadd.f32 0.0, %v743
        %v745 = vpop.f32.mrf.mxu0
        %v746 = vadd.f32 0.0, %v745
        %747 = vmatmul.bf16.gmra.mxu0 %v543
        %v748 = vpop.f32.mrf.mxu0
        %v749 = vadd.f32 0.0, %v748
        %v750 = vpop.f32.mrf.mxu0
        %v751 = vadd.f32 0.0, %v750
        %752 = vmatmul.bf16.gmra.mxu0 %v545
        %v753 = vpop.f32.mrf.mxu0
        %v754 = vadd.f32 0.0, %v753
        %v755 = vpop.f32.mrf.mxu0
        %v756 = vadd.f32 0.0, %v755
        %757 = vmatmul.bf16.gmra.mxu0 %v547
        %v758 = vpop.f32.mrf.mxu0
        %v759 = vadd.f32 0.0, %v758
        %v760 = vpop.f32.mrf.mxu0
        %v761 = vadd.f32 0.0, %v760
        %762 = vdwg.mxu0
        %763 = vmatpush.bf16.msra.mxu0 0
        %764 = vmatpush.bf16.msra.mxu0 0
        %765 = vmatpush.bf16.msra.mxu0 0
        %766 = vmatpush.bf16.msra.mxu0 0
        %767 = vmatpush.bf16.msra.mxu0 0
        %768 = vmatpush.bf16.msra.mxu0 0
        %769 = vmatpush.bf16.msra.mxu0 %v614
        %770 = vmatpush.bf16.msra.mxu0 %v613
        %771 = vmatmul.bf16.gmra.mxu0 %v627
        %v772 = vpop.f32.mrf.mxu0
        %v773 = vadd.f32 %v684, %v772
        %v774 = vpop.f32.mrf.mxu0
        %v775 = vadd.f32 %v686, %v774
        %776 = vmatmul.bf16.gmra.mxu0 %v630
        %v777 = vpop.f32.mrf.mxu0
        %v778 = vadd.f32 %v689, %v777
        %v779 = vpop.f32.mrf.mxu0
        %v780 = vadd.f32 %v691, %v779
        %781 = vmatmul.bf16.gmra.mxu0 %v633
        %v782 = vpop.f32.mrf.mxu0
        %v783 = vadd.f32 %v694, %v782
        %v784 = vpop.f32.mrf.mxu0
        %v785 = vadd.f32 %v696, %v784
        %786 = vmatmul.bf16.gmra.mxu0 %v636
        %v787 = vpop.f32.mrf.mxu0
        %v788 = vadd.f32 %v699, %v787
        %v789 = vpop.f32.mrf.mxu0
        %v790 = vadd.f32 %v701, %v789
        %791 = vmatmul.bf16.gmra.mxu0 %v639
        %v792 = vpop.f32.mrf.mxu0
        %v793 = vadd.f32 %v704, %v792
        %v794 = vpop.f32.mrf.mxu0
        %v795 = vadd.f32 %v706, %v794
        %796 = vmatmul.bf16.gmra.mxu0 %v642
        %v797 = vpop.f32.mrf.mxu0
        %v798 = vadd.f32 %v709, %v797
        %v799 = vpop.f32.mrf.mxu0
        %v800 = vadd.f32 %v711, %v799
        %801 = vmatmul.bf16.gmra.mxu0 %v645
        %v802 = vpop.f32.mrf.mxu0
        %v803 = vadd.f32 %v714, %v802
        %v804 = vpop.f32.mrf.mxu0
        %v805 = vadd.f32 %v716, %v804
        %806 = vmatmul.bf16.gmra.mxu0 %v648
        %v807 = vpop.f32.mrf.mxu0
        %v808 = vadd.f32 %v719, %v807
        %v809 = vpop.f32.mrf.mxu0
        %v810 = vadd.f32 %v721, %v809
        %811 = vmatmul.bf16.gmra.mxu0 %v651
        %v812 = vpop.f32.mrf.mxu0
        %v813 = vadd.f32 %v724, %v812
        %v814 = vpop.f32.mrf.mxu0
        %v815 = vadd.f32 %v726, %v814
        %816 = vmatmul.bf16.gmra.mxu0 %v654
        %v817 = vpop.f32.mrf.mxu0
        %v818 = vadd.f32 %v729, %v817
        %v819 = vpop.f32.mrf.mxu0
        %v820 = vadd.f32 %v731, %v819
        %821 = vmatmul.bf16.gmra.mxu0 %v657
        %v822 = vpop.f32.mrf.mxu0
        %v823 = vadd.f32 %v734, %v822
        %v824 = vpop.f32.mrf.mxu0
        %v825 = vadd.f32 %v736, %v824
        %826 = vmatmul.bf16.gmra.mxu0 %v660
        %v827 = vpop.f32.mrf.mxu0
        %v828 = vadd.f32 %v739, %v827
        %v829 = vpop.f32.mrf.mxu0
        %v830 = vadd.f32 %v741, %v829
        %831 = vmatmul.bf16.gmra.mxu0 %v663
        %v832 = vpop.f32.mrf.mxu0
        %v833 = vadd.f32 %v744, %v832
        %v834 = vpop.f32.mrf.mxu0
        %v835 = vadd.f32 %v746, %v834
        %836 = vmatmul.bf16.gmra.mxu0 %v666
        %v837 = vpop.f32.mrf.mxu0
        %v838 = vadd.f32 %v749, %v837
        %v839 = vpop.f32.mrf.mxu0
        %v840 = vadd.f32 %v751, %v839
        %841 = vmatmul.bf16.gmra.mxu0 %v669
        %v842 = vpop.f32.mrf.mxu0
        %v843 = vadd.f32 %v754, %v842
        %v844 = vpop.f32.mrf.mxu0
        %v845 = vadd.f32 %v756, %v844
        %846 = vmatmul.bf16.gmra.mxu0 %v672
        %v847 = vpop.f32.mrf.mxu0
        %v848 = vadd.f32 %v759, %v847
        %v849 = vpop.f32.mrf.mxu0
        %v850 = vadd.f32 %v761, %v849
        %851 = vdwg.mxu0
        %v852 = vadd.f32 %v337, %v773
        %v853 = vadd.f32 %v338, %v775
        %v854 = vadd.f32 %v339, %v778
        %v855 = vadd.f32 %v340, %v780
        %v856 = vadd.f32 %v341, %v783
        %v857 = vadd.f32 %v342, %v785
        %v858 = vadd.f32 %v343, %v788
        %v859 = vadd.f32 %v344, %v790
        %v860 = vadd.f32 %v345, %v793
        %v861 = vadd.f32 %v346, %v795
        %v862 = vadd.f32 %v347, %v798
        %v863 = vadd.f32 %v348, %v800
        %v864 = vadd.f32 %v349, %v803
        %v865 = vadd.f32 %v350, %v805
        %v866 = vadd.f32 %v351, %v808
        %v867 = vadd.f32 %v352, %v810
        %v868 = vadd.f32 %v353, %v813
        %v869 = vadd.f32 %v354, %v815
        %v870 = vadd.f32 %v355, %v818
        %v871 = vadd.f32 %v356, %v820
        %v872 = vadd.f32 %v357, %v823
        %v873 = vadd.f32 %v358, %v825
        %v874 = vadd.f32 %v359, %v828
        %v875 = vadd.f32 %v360, %v830
        %v876 = vadd.f32 %v361, %v833
        %v877 = vadd.f32 %v362, %v835
        %v878 = vadd.f32 %v363, %v838
        %v879 = vadd.f32 %v364, %v840
        %v880 = vadd.f32 %v365, %v843
        %v881 = vadd.f32 %v366, %v845
        %v882 = vadd.f32 %v367, %v848
        %v883 = vadd.f32 %v368, %v850
        %884 = vst [vmem:[#allocation2] sm:$0xff] %v852
        %885 = vst [vmem:[#allocation2 + $0x8] sm:$0xff] %v853
        %886 = vst [vmem:[#allocation2 + $0x10] sm:$0xff] %v854
        %887 = vst [vmem:[#allocation2 + $0x18] sm:$0xff] %v855
        %888 = vst [vmem:[#allocation2 + $0x20] sm:$0xff] %v856
        %889 = vst [vmem:[#allocation2 + $0x28] sm:$0xff] %v857
        %890 = vst [vmem:[#allocation2 + $0x30] sm:$0xff] %v858
        %891 = vst [vmem:[#allocation2 + $0x38] sm:$0xff] %v859
        %892 = vst [vmem:[#allocation2 + $0x40] sm:$0xff] %v860
        %893 = vst [vmem:[#allocation2 + $0x48] sm:$0xff] %v861
        %894 = vst [vmem:[#allocation2 + $0x50] sm:$0xff] %v862
        %895 = vst [vmem:[#allocation2 + $0x58] sm:$0xff] %v863
        %896 = vst [vmem:[#allocation2 + $0x60] sm:$0xff] %v864
        %897 = vst [vmem:[#allocation2 + $0x68] sm:$0xff] %v865
        %898 = vst [vmem:[#allocation2 + $0x70] sm:$0xff] %v866
        %899 = vst [vmem:[#allocation2 + $0x78] sm:$0xff] %v867
        %900 = vst [vmem:[#allocation2 + $0x80] sm:$0xff] %v868
        %901 = vst [vmem:[#allocation2 + $0x88] sm:$0xff] %v869
        %902 = vst [vmem:[#allocation2 + $0x90] sm:$0xff] %v870
        %903 = vst [vmem:[#allocation2 + $0x98] sm:$0xff] %v871
        %904 = vst [vmem:[#allocation2 + $0xa0] sm:$0xff] %v872
        %905 = vst [vmem:[#allocation2 + $0xa8] sm:$0xff] %v873
        %906 = vst [vmem:[#allocation2 + $0xb0] sm:$0xff] %v874
        %907 = vst [vmem:[#allocation2 + $0xb8] sm:$0xff] %v875
        %908 = vst [vmem:[#allocation2 + $0xc0] sm:$0xff] %v876
        %909 = vst [vmem:[#allocation2 + $0xc8] sm:$0xff] %v877
        %910 = vst [vmem:[#allocation2 + $0xd0] sm:$0xff] %v878
        %911 = vst [vmem:[#allocation2 + $0xd8] sm:$0xff] %v879
        %912 = vst [vmem:[#allocation2 + $0xe0] sm:$0xff] %v880
        %913 = vst [vmem:[#allocation2 + $0xe8] sm:$0xff] %v881
        %914 = vst [vmem:[#allocation2 + $0xf0] sm:$0xff] %v882
        %915 = vst [vmem:[#allocation2 + $0xf8] sm:$0xff] %v883
        // Predicated region
        $region41: #{tpu_custom_call.1} parent=35 // pred_check
          %p916 = pneg %p301
        $region42: #{tpu_custom_call.1} parent=35 // pred_check_branch
          %918 = sbr.rel (%p916) target = $region44
        $region43: #{tpu_custom_call.1} parent=35 // pred_region
          %v919 = vld [vmem:[#allocation2] sm:$0xff]
          %v920 = vld [vmem:[#allocation2 + $0x8] sm:$0xff]
          %v921 = vld [vmem:[#allocation2 + $0x10] sm:$0xff]
          %v922 = vld [vmem:[#allocation2 + $0x18] sm:$0xff]
          %v923 = vld [vmem:[#allocation2 + $0x20] sm:$0xff]
          %v924 = vld [vmem:[#allocation2 + $0x28] sm:$0xff]
          %v925 = vld [vmem:[#allocation2 + $0x30] sm:$0xff]
          %v926 = vld [vmem:[#allocation2 + $0x38] sm:$0xff]
          %v927 = vld [vmem:[#allocation2 + $0x40] sm:$0xff]
          %v928 = vld [vmem:[#allocation2 + $0x48] sm:$0xff]
          %v929 = vld [vmem:[#allocation2 + $0x50] sm:$0xff]
          %v930 = vld [vmem:[#allocation2 + $0x58] sm:$0xff]
          %v931 = vld [vmem:[#allocation2 + $0x60] sm:$0xff]
          %v932 = vld [vmem:[#allocation2 + $0x68] sm:$0xff]
          %v933 = vld [vmem:[#allocation2 + $0x70] sm:$0xff]
          %v934 = vld [vmem:[#allocation2 + $0x78] sm:$0xff]
          %v935 = vld [vmem:[#allocation2 + $0x80] sm:$0xff]
          %v936 = vld [vmem:[#allocation2 + $0x88] sm:$0xff]
          %v937 = vld [vmem:[#allocation2 + $0x90] sm:$0xff]
          %v938 = vld [vmem:[#allocation2 + $0x98] sm:$0xff]
          %v939 = vld [vmem:[#allocation2 + $0xa0] sm:$0xff]
          %v940 = vld [vmem:[#allocation2 + $0xa8] sm:$0xff]
          %v941 = vld [vmem:[#allocation2 + $0xb0] sm:$0xff]
          %v942 = vld [vmem:[#allocation2 + $0xb8] sm:$0xff]
          %v943 = vld [vmem:[#allocation2 + $0xc0] sm:$0xff]
          %v944 = vld [vmem:[#allocation2 + $0xc8] sm:$0xff]
          %v945 = vld [vmem:[#allocation2 + $0xd0] sm:$0xff]
          %v946 = vld [vmem:[#allocation2 + $0xd8] sm:$0xff]
          %v947 = vld [vmem:[#allocation2 + $0xe0] sm:$0xff]
          %v948 = vld [vmem:[#allocation2 + $0xe8] sm:$0xff]
          %v949 = vld [vmem:[#allocation2 + $0xf0] sm:$0xff]
          %v950 = vld [vmem:[#allocation2 + $0xf8] sm:$0xff]
          %v951 = vld [vmem:[%s295] sm:$0x1]
          %v953 = vperm.slane %v951, 0
          %v955 = vmul.f32 %v919, %v953
          %v956 = vmul.f32 %v920, %v953
          %v957 = vmul.f32 %v921, %v953
          %v958 = vmul.f32 %v922, %v953
          %v959 = vmul.f32 %v923, %v953
          %v960 = vmul.f32 %v924, %v953
          %v961 = vmul.f32 %v925, %v953
          %v962 = vmul.f32 %v926, %v953
          %v963 = vmul.f32 %v927, %v953
          %v964 = vmul.f32 %v928, %v953
          %v965 = vmul.f32 %v929, %v953
          %v966 = vmul.f32 %v930, %v953
          %v967 = vmul.f32 %v931, %v953
          %v968 = vmul.f32 %v932, %v953
          %v969 = vmul.f32 %v933, %v953
          %v970 = vmul.f32 %v934, %v953
          %v971 = vmul.f32 %v935, %v953
          %v972 = vmul.f32 %v936, %v953
          %v973 = vmul.f32 %v937, %v953
          %v974 = vmul.f32 %v938, %v953
          %v975 = vmul.f32 %v939, %v953
          %v976 = vmul.f32 %v940, %v953
          %v977 = vmul.f32 %v941, %v953
          %v978 = vmul.f32 %v942, %v953
          %v979 = vmul.f32 %v943, %v953
          %v980 = vmul.f32 %v944, %v953
          %v981 = vmul.f32 %v945, %v953
          %v982 = vmul.f32 %v946, %v953
          %v983 = vmul.f32 %v947, %v953
          %v984 = vmul.f32 %v948, %v953
          %v985 = vmul.f32 %v949, %v953
          %v986 = vmul.f32 %v950, %v953
          %v987 = vld [vmem:[%s298] sm:$0x1]
          %v989 = vperm.slane %v987, 0
          %v991 = vadd.f32 %v955, %v989
          %v992 = vadd.f32 %v956, %v989
          %v993 = vadd.f32 %v957, %v989
          %v994 = vadd.f32 %v958, %v989
          %v995 = vadd.f32 %v959, %v989
          %v996 = vadd.f32 %v960, %v989
          %v997 = vadd.f32 %v961, %v989
          %v998 = vadd.f32 %v962, %v989
          %v999 = vadd.f32 %v963, %v989
          %v1000 = vadd.f32 %v964, %v989
          %v1001 = vadd.f32 %v965, %v989
          %v1002 = vadd.f32 %v966, %v989
          %v1003 = vadd.f32 %v967, %v989
          %v1004 = vadd.f32 %v968, %v989
          %v1005 = vadd.f32 %v969, %v989
          %v1006 = vadd.f32 %v970, %v989
          %v1007 = vadd.f32 %v971, %v989
          %v1008 = vadd.f32 %v972, %v989
          %v1009 = vadd.f32 %v973, %v989
          %v1010 = vadd.f32 %v974, %v989
          %v1011 = vadd.f32 %v975, %v989
          %v1012 = vadd.f32 %v976, %v989
          %v1013 = vadd.f32 %v977, %v989
          %v1014 = vadd.f32 %v978, %v989
          %v1015 = vadd.f32 %v979, %v989
          %v1016 = vadd.f32 %v980, %v989
          %v1017 = vadd.f32 %v981, %v989
          %v1018 = vadd.f32 %v982, %v989
          %v1019 = vadd.f32 %v983, %v989
          %v1020 = vadd.f32 %v984, %v989
          %v1021 = vadd.f32 %v985, %v989
          %v1022 = vadd.f32 %v986, %v989
          %v1023 = vmax.f32 %v991, 0.0
          %v1024 = vmax.f32 %v992, 0.0
          %v1025 = vmax.f32 %v993, 0.0
          %v1026 = vmax.f32 %v994, 0.0
          %v1027 = vmax.f32 %v995, 0.0
          %v1028 = vmax.f32 %v996, 0.0
          %v1029 = vmax.f32 %v997, 0.0
          %v1030 = vmax.f32 %v998, 0.0
          %v1031 = vmax.f32 %v999, 0.0
          %v1032 = vmax.f32 %v1000, 0.0
          %v1033 = vmax.f32 %v1001, 0.0
          %v1034 = vmax.f32 %v1002, 0.0
          %v1035 = vmax.f32 %v1003, 0.0
          %v1036 = vmax.f32 %v1004, 0.0
          %v1037 = vmax.f32 %v1005, 0.0
          %v1038 = vmax.f32 %v1006, 0.0
          %v1039 = vmax.f32 %v1007, 0.0
          %v1040 = vmax.f32 %v1008, 0.0
          %v1041 = vmax.f32 %v1009, 0.0
          %v1042 = vmax.f32 %v1010, 0.0
          %v1043 = vmax.f32 %v1011, 0.0
          %v1044 = vmax.f32 %v1012, 0.0
          %v1045 = vmax.f32 %v1013, 0.0
          %v1046 = vmax.f32 %v1014, 0.0
          %v1047 = vmax.f32 %v1015, 0.0
          %v1048 = vmax.f32 %v1016, 0.0
          %v1049 = vmax.f32 %v1017, 0.0
          %v1050 = vmax.f32 %v1018, 0.0
          %v1051 = vmax.f32 %v1019, 0.0
          %v1052 = vmax.f32 %v1020, 0.0
          %v1053 = vmax.f32 %v1021, 0.0
          %v1054 = vmax.f32 %v1022, 0.0
          %v1055 = vpack.c.bf16 %v1023, %v1023
          %v1056 = vpack.c.bf16 %v1024, %v1024
          %v1057 = vpack.c.bf16 %v1025, %v1025
          %v1058 = vpack.c.bf16 %v1026, %v1026
          %v1059 = vpack.c.bf16 %v1027, %v1027
          %v1060 = vpack.c.bf16 %v1028, %v1028
          %v1061 = vpack.c.bf16 %v1029, %v1029
          %v1062 = vpack.c.bf16 %v1030, %v1030
          %v1063 = vpack.c.bf16 %v1031, %v1031
          %v1064 = vpack.c.bf16 %v1032, %v1032
          %v1065 = vpack.c.bf16 %v1033, %v1033
          %v1066 = vpack.c.bf16 %v1034, %v1034
          %v1067 = vpack.c.bf16 %v1035, %v1035
          %v1068 = vpack.c.bf16 %v1036, %v1036
          %v1069 = vpack.c.bf16 %v1037, %v1037
          %v1070 = vpack.c.bf16 %v1038, %v1038
          %v1071 = vpack.c.bf16 %v1039, %v1039
          %v1072 = vpack.c.bf16 %v1040, %v1040
          %v1073 = vpack.c.bf16 %v1041, %v1041
          %v1074 = vpack.c.bf16 %v1042, %v1042
          %v1075 = vpack.c.bf16 %v1043, %v1043
          %v1076 = vpack.c.bf16 %v1044, %v1044
          %v1077 = vpack.c.bf16 %v1045, %v1045
          %v1078 = vpack.c.bf16 %v1046, %v1046
          %v1079 = vpack.c.bf16 %v1047, %v1047
          %v1080 = vpack.c.bf16 %v1048, %v1048
          %v1081 = vpack.c.bf16 %v1049, %v1049
          %v1082 = vpack.c.bf16 %v1050, %v1050
          %v1083 = vpack.c.bf16 %v1051, %v1051
          %v1084 = vpack.c.bf16 %v1052, %v1052
          %v1085 = vpack.c.bf16 %v1053, %v1053
          %v1086 = vpack.c.bf16 %v1054, %v1054
          %1087 = vst [vmem:[%s271] sm:$0xf] %v1055
          %1088 = vst [vmem:[%s271 + $0x4] sm:$0xf] %v1056
          %1089 = vst [vmem:[%s271 + $0x8] sm:$0xf] %v1057
          %1090 = vst [vmem:[%s271 + $0xc] sm:$0xf] %v1058
          %1091 = vst [vmem:[%s271 + $0x10] sm:$0xf] %v1059
          %1092 = vst [vmem:[%s271 + $0x14] sm:$0xf] %v1060
          %1093 = vst [vmem:[%s271 + $0x18] sm:$0xf] %v1061
          %1094 = vst [vmem:[%s271 + $0x1c] sm:$0xf] %v1062
          %1095 = vst [vmem:[%s271 + $0x20] sm:$0xf] %v1063
          %1096 = vst [vmem:[%s271 + $0x24] sm:$0xf] %v1064
          %1097 = vst [vmem:[%s271 + $0x28] sm:$0xf] %v1065
          %1098 = vst [vmem:[%s271 + $0x2c] sm:$0xf] %v1066
          %1099 = vst [vmem:[%s271 + $0x30] sm:$0xf] %v1067
          %1100 = vst [vmem:[%s271 + $0x34] sm:$0xf] %v1068
          %1101 = vst [vmem:[%s271 + $0x38] sm:$0xf] %v1069
          %1102 = vst [vmem:[%s271 + $0x3c] sm:$0xf] %v1070
          %1103 = vst [vmem:[%s271 + $0x40] sm:$0xf] %v1071
          %1104 = vst [vmem:[%s271 + $0x44] sm:$0xf] %v1072
          %1105 = vst [vmem:[%s271 + $0x48] sm:$0xf] %v1073
          %1106 = vst [vmem:[%s271 + $0x4c] sm:$0xf] %v1074
          %1107 = vst [vmem:[%s271 + $0x50] sm:$0xf] %v1075
          %1108 = vst [vmem:[%s271 + $0x54] sm:$0xf] %v1076
          %1109 = vst [vmem:[%s271 + $0x58] sm:$0xf] %v1077
          %1110 = vst [vmem:[%s271 + $0x5c] sm:$0xf] %v1078
          %1111 = vst [vmem:[%s271 + $0x60] sm:$0xf] %v1079
          %1112 = vst [vmem:[%s271 + $0x64] sm:$0xf] %v1080
          %1113 = vst [vmem:[%s271 + $0x68] sm:$0xf] %v1081
          %1114 = vst [vmem:[%s271 + $0x6c] sm:$0xf] %v1082
          %1115 = vst [vmem:[%s271 + $0x70] sm:$0xf] %v1083
          %1116 = vst [vmem:[%s271 + $0x74] sm:$0xf] %v1084
          %1117 = vst [vmem:[%s271 + $0x78] sm:$0xf] %v1085
          %1118 = vst [vmem:[%s271 + $0x7c] sm:$0xf] %v1086
        $region44: #{tpu_custom_call.1} parent=35 // pred_fallthru
          _
        %s1119 = sand.u32 %s155, 1
        %s1120 = scalar_lea.sflag [#allocation4], %s1119
        %s1121 = sand.u32 %s155, 1
        %s1122 = smul.addr %s1121, 128
        %s1123 = scalar_lea.vmem [#allocation3], %s1122
        // Predicated region
        $region45: #{tpu_custom_call.1} parent=35 // pred_check
          %p1124 = pneg %p165
        $region46: #{tpu_custom_call.1} parent=35 // pred_check_branch
          %1126 = sbr.rel (%p1124) target = $region48
        $region47: #{tpu_custom_call.1} parent=35 // pred_region
          %s1127 = smul.u32 32, %s23
          %1129 = vsyncadd %s1120, 0
          %s1130 = sadd.s32 %s24, %s1127
          %s1131 = smul.addr %s1130, 4
          %s1132 = scalar_lea.hbm %s4, %s1131
          %s1133 = sshll.u32 %s1123, 4
          %s1134 = int_to_ptr.vmem [resolvable:$true] %s1133
          %s1135 = sshll.u32 %s1132, 4
          %s1136 = int_to_ptr.hbm [resolvable:$true] %s1135
          %1141 = dma.vmem_to_hbm [thread:$0]  %s1134, 2048, %s1136, %s1120, 64, 64, 4
        $region48: #{tpu_custom_call.1} parent=35 // pred_fallthru
          _
      $region36: #{tpu_custom_call.1} parent=5 // pred_fallthru
        _
      %p1142 = scmp.le.s32.totalorder 2, %s13
      // Predicated region
      $region49: #{tpu_custom_call.1} parent=5 // pred_check
        %p1143 = pneg %p1142
      $region50: #{tpu_custom_call.1} parent=5 // pred_check_branch
        %1145 = sbr.rel (%p1143) target = $region52
      $region51: #{tpu_custom_call.1} parent=5 // pred_region
        %s1146 = ssub.s32 %s13, 2
        // Predicated region
        $region53: #{tpu_custom_call.1} parent=51 // pred_check
          %p1147 = pneg %p171
        $region54: #{tpu_custom_call.1} parent=51 // pred_check_branch
          %1149 = sbr.rel (%p1147) target = $region56
        $region55: #{tpu_custom_call.1} parent=51 // pred_region
          %s1150 = sand.u32 %s156, 1
          %s1151 = scalar_lea.sflag [#allocation4], %s1150
          %s1152 = sand.u32 %s156, 1
          %s1153 = smul.addr %s1152, 128
          %s1154 = scalar_lea.vmem [#allocation3], %s1153
          %1156 = dma.done %s1151, 2048
        $region56: #{tpu_custom_call.1} parent=51 // pred_fallthru
          _
      $region52: #{tpu_custom_call.1} parent=5 // pred_fallthru
        _
    $region6: #{tpu_custom_call.1} parent=1 // loop_footer
      %s17 = sadd.s32 1, %s13
    $region7: #{tpu_custom_call.1} parent=1 // loop_footer_branch
      %12 = sbr.rel target = $region3
    $region8: #{tpu_custom_call.1} parent=1 // loop_exit
      _
    %1157 = vsyncpa [#allocation4], 1
    %s1158 = scalar_lea.sflag [#allocation4], 1
    %1159 = vsyncpa %s1158, 1

</llo_original>
